<compile_context>
chip_gen: v5e
topology: v5e:2x2
jax: 0.10.0
libtpu: 0.0.40
codegen_flags: <defaults>
</compile_context>

<pallas_src>
import functools

import numpy as np
import jax
import jax.numpy as jnp
from jax.experimental import pallas as pl
from jax.experimental.pallas import tpu as pltpu


# --------------------------------------------------------------------------
# Parameter setup (deterministic, mirrors the torch __init__ exactly)
# --------------------------------------------------------------------------
def build_pos_encoding(d_model: int, max_sequence_len: int) -> jnp.ndarray:
    position = np.array(
        [[pos / np.power(10000, 2 * i / d_model) for i in range(int(d_model / 2) + 1)]
         for pos in range(max_sequence_len)]
    )
    pos_encode = np.zeros((max_sequence_len, d_model), dtype=np.float64)
    n_even = pos_encode[0, ::2].shape[0]
    n_odd = pos_encode[0, 1::2].shape[0]
    pos_encode[:, ::2] = np.sin(position[:, list(range(n_even))])
    pos_encode[:, 1::2] = np.cos(position[:, list(range(n_odd))])
    return jnp.asarray(pos_encode, dtype=jnp.float32)


# --------------------------------------------------------------------------
# Pallas kernel
# --------------------------------------------------------------------------
def _mix_u32(x):
    """splitmix32-style finalizer; wraps mod 2**32 on uint32."""
    x = x ^ (x >> 16)
    x = x * jnp.uint32(0x7FEB352D)
    x = x ^ (x >> 15)
    x = x * jnp.uint32(0x846CA68B)
    x = x ^ (x >> 16)
    return x


def _pe_kernel(seed_ref, x_ref, pe_ref, o_ref, *, p_drop: float, train: bool):
    # x_ref : (TB, TF) VMEM tile of the flattened [B, S*D] activations
    # pe_ref: (1,  TF) VMEM tile of the flattened positional table
    y = x_ref[...] + pe_ref[...]                      # broadcast add over batch rows

    if train and p_drop > 0.0:
        # Inverted dropout with a stateless counter-hash PRNG: each element's
        # bits depend on (seed, global_row, global_col), so masks are
        # independent across rows inside a block and across grid steps.
        # TODO(synk): torch's dropout RNG stream cannot be bit-reproduced; only
        # the distribution/scaling semantics are matched here.
        tb, tf = y.shape
        row0 = pl.program_id(0) * tb
        col0 = pl.program_id(1) * tf
        row = (jax.lax.broadcasted_iota(jnp.int32, (tb, tf), 0) + row0).astype(jnp.uint32)
        col = (jax.lax.broadcasted_iota(jnp.int32, (tb, tf), 1) + col0).astype(jnp.uint32)
        seed_u = seed_ref[0].astype(jnp.uint32) ^ jnp.uint32(0x9E3779B9)
        bits = _mix_u32(col ^ _mix_u32(row ^ _mix_u32(seed_u)))
        # top 24 bits -> uniform in [0, 1)
        r24 = (bits >> 8).astype(jnp.int32).astype(jnp.float32)
        uniform = r24 * jnp.float32(1.0 / (1 << 24))
        keep = uniform >= jnp.float32(p_drop)          # P(keep) = 1 - p
        scale = jnp.asarray(1.0 / (1.0 - p_drop), dtype=y.dtype)
        y = jnp.where(keep, y * scale, jnp.zeros_like(y))

    o_ref[...] = y.astype(o_ref.dtype)


# --------------------------------------------------------------------------
# Tiling heuristic: big, lane-dense slabs sized well under every chip's VMEM
# --------------------------------------------------------------------------
def _choose_tiles(B: int, F: int, itemsize: int,
                  target_tile_bytes: int = 4 * 1024 * 1024):
    # Flattened-feature tile: multiple of 128 (lane-dense, unmasked stores),
    # capped at ~512 KiB per row-chunk; otherwise take the full axis.
    if F % 128 == 0:
        per_row_cap = max(128, (512 * 1024) // itemsize)
        TF = min(F, (per_row_cap // 128) * 128)
    else:
        TF = F
    # Batch-row tile: multiple of 8 (or the full batch), targeting ~4 MiB/tile
    # so x + out double-buffers stay <= ~16-20 MiB (fits v7x's 64 MiB per TC).
    rows = max(1, target_tile_bytes // (TF * itemsize))
    if rows >= B or B <= 8:
        TB = B
    elif rows >= 8:
        TB = (rows // 8) * 8
    else:
        TB = 8
    return TB, TF


# --------------------------------------------------------------------------
# Wrapper
# --------------------------------------------------------------------------
def position_encode_forward(x, pos_encoding, *, p_drop: float = 0.1,
                            train: bool = False, seed: int = 0):
    """x: [B, S, D] ; pos_encoding: [max_seq, D] float32."""
    B, S, D = x.shape
    F = S * D
    x2 = x.reshape(B, F)
    # TODO(synk): pe row-slice + flatten is done in plain JAX; it is tiny vs. x
    # traffic and is the price of keeping the kernel's last dim lane-dense for D < 128.
    pe2 = pos_encoding[:S, :].astype(x.dtype).reshape(1, F)

    itemsize = jnp.dtype(x.dtype).itemsize
    TB, TF = _choose_tiles(B, F, itemsize)
    grid = (pl.cdiv(B, TB), pl.cdiv(F, TF))

    kernel = functools.partial(_pe_kernel, p_drop=float(p_drop), train=bool(train))

    out2 = pl.pallas_call(
        kernel,
        out_shape=jax.ShapeDtypeStruct((B, F), x.dtype),
        grid_spec=pltpu.PrefetchScalarGridSpec(
            num_scalar_prefetch=1,                            # dropout seed in SMEM
            grid=grid,
            in_specs=[
                pl.BlockSpec((TB, TF), lambda b, f, seed_ref: (b, f)),
                pl.BlockSpec((1, TF), lambda b, f, seed_ref: (0, f)),
            ],
            out_specs=pl.BlockSpec((TB, TF), lambda b, f, seed_ref: (b, f)),
        ),
        compiler_params=pltpu.CompilerParams(
            dimension_semantics=("parallel", "parallel"),     # megacore-shardable
            vmem_limit_bytes=48 * 1024 * 1024,
        ),
    )(jnp.asarray([seed], dtype=jnp.int32), x2, pe2)

    return out2.reshape(B, S, D)


# --------------------------------------------------------------------------
# Demo / self-check
# --------------------------------------------------------------------------
if __name__ == "__main__":
    d_model = 32
    max_sequence_len = 16
    batch, seq = 2, 8

    pos_encoding = build_pos_encoding(d_model, max_sequence_len)

    key = jax.random.PRNGKey(0)
    x = jax.random.normal(key, (batch, seq, d_model), dtype=jnp.float32)

    # Eval-mode pass (dropout is identity) -> compare against pure-JAX reference.
    out_eval = jax.block_until_ready(
        position_encode_forward(x, pos_encoding, p_drop=0.1, train=False))
    ref = np.asarray(x) + np.asarray(pos_encoding)[:seq, :][None, :, :]
    np.testing.assert_allclose(np.asarray(out_eval), ref, rtol=1e-6, atol=1e-6)

    # Train-mode pass (exercises the in-kernel dropout path).
    p = 0.1
    out_train = jax.block_until_ready(
        position_encode_forward(x, pos_encoding, p_drop=p, train=True, seed=1234))
    assert out_train.shape == (batch, seq, d_model)
    ot = np.asarray(out_train)
    kept = ot != 0.0
    # Every kept element must equal (x + pe) / (1 - p); dropped elements are 0.
    np.testing.assert_allclose(ot[kept], (ref / (1.0 - p))[kept], rtol=1e-5, atol=1e-5)
    assert 0.6 < kept.mean() <= 1.0

    print("KERNEL_OK")
</pallas_src>

<mosaic_0001>
module attributes {stable_mosaic.version = 11 : i64} {
  func.func @_pe_kernel(%arg0: i32, %arg1: i32, %arg2: memref<1xi32, #tpu.memory_space<smem>>, %arg3: memref<2x256xf32, #tpu.memory_space<vmem>>, %arg4: memref<1x256xf32, #tpu.memory_space<vmem>>, %arg5: memref<2x256xf32, #tpu.memory_space<vmem>>) attributes {dimension_semantics = [#tpu.dimension_semantics<parallel>, #tpu.dimension_semantics<parallel>], iteration_bounds = array<i64: 1, 1>, scalar_prefetch = 1 : i64, scratch_operands = 0 : i64, tpu.core_type = #tpu.core_type<tc>, window_params = [{transform_indices = @transform_0, window_bounds = array<i64: 2, 256>}, {transform_indices = @transform_1, window_bounds = array<i64: 1, 256>}, {transform_indices = @transform_2, window_bounds = array<i64: 2, 256>}]} {
    %c0 = arith.constant 0 : index
    %c0_0 = arith.constant 0 : index
    %0 = vector.load %arg3[%c0, %c0_0] : memref<2x256xf32, #tpu.memory_space<vmem>>, vector<2x256xf32>
    %c0_1 = arith.constant 0 : index
    %c0_2 = arith.constant 0 : index
    %1 = vector.load %arg4[%c0_1, %c0_2] : memref<1x256xf32, #tpu.memory_space<vmem>>, vector<1x256xf32>
    %2 = vector.broadcast %1 : vector<1x256xf32> to vector<2x256xf32>
    %3 = arith.addf %0, %2 : vector<2x256xf32>
    %c0_3 = arith.constant 0 : index
    %c0_4 = arith.constant 0 : index
    %4 = vector.load %arg5[%c0_3, %c0_4] : memref<2x256xf32, #tpu.memory_space<vmem>>, vector<2x256xf32>
    tpu.vector_store %arg5[%c0_3, %c0_4], %3 {strides = array<i32>} : memref<2x256xf32, #tpu.memory_space<vmem>>, vector<2x256xf32>,
    return
  }
  func.func @transform_0(%arg0: i32, %arg1: i32, %arg2: memref<1xi32, #tpu.memory_space<smem>>) -> (i32, i32) {
    %c0_i32 = arith.constant 0 : i32
    return %arg0, %arg1 : i32, i32
  }
  func.func @transform_1(%arg0: i32, %arg1: i32, %arg2: memref<1xi32, #tpu.memory_space<smem>>) -> (i32, i32) {
    %c0_i32 = arith.constant 0 : i32
    %c0_i32_0 = arith.constant 0 : i32
    return %c0_i32, %arg1 : i32, i32
  }
  func.func @transform_2(%arg0: i32, %arg1: i32, %arg2: memref<1xi32, #tpu.memory_space<smem>>) -> (i32, i32) {
    %c0_i32 = arith.constant 0 : i32
    return %arg0, %arg1 : i32, i32
  }
}

</mosaic_0001>

<llo_original>
// kernel: tpu_custom_call.1
$region0: #{tpu_custom_call.1}
  #allocation0 [shape = 'u32[]', space=smem, size = 0x4, offset = 0x4, fixed_abs, tag = 'smem constant byte address 0x4 - core index']
  #allocation1 [shape = 'u32[72,128]{1,0:T(1,128)}', space=vmem, size = 0x9000, scoped, tag = 'internal scratch']
  #allocation2 [shape = 's32[1]{0}', space=sflag, size = 0x4, scoped, tag = 'scoped memory for tpu_custom_call.1']
  #allocation3 [shape = 's32[1]{0:T(128)S(6)}', space=smem, size = 0x200, scoped, tag = 'prefetched SMEM operand 0']
  %s0 = inlined_call_operand.<no memory space> [shape: s32[1], index: 0, kind: input, shape index: {}]
  %s1 = inlined_call_operand.hbm [shape: f32[2,256], index: 1, kind: input, shape index: {}]
  %s2 = inlined_call_operand.vmem [shape: f32[1,256], index: 2, kind: input, shape index: {}]
  %s3 = inlined_call_operand.hbm [shape: f32[2,256], index: 3, kind: output, shape index: {}]
  %s4 = sld [smem:[#allocation0]]
  $region22: #{tpu_custom_call.1} parent=0
    _
  %s6 = ssub.s32 1, %s4
  %s7 = scalar_select 0, %s6, %s4
  %8 = sst [smem:[#allocation3]] %s0
  $region1: #{tpu_custom_call.1} parent=0
    #allocation4 [shape = 'u8[2048]{0}', space=vmem, size = 0x800, scoped, tag = 'input window, operand 1, single buffered']
    #allocation5 [shape = 's32[1]{0}', space=sflag, size = 0x4, scoped, tag = 'scoped memory for tpu_custom_call.1']
    #allocation6 [shape = 's32[1]{0}', space=sflag, size = 0x4, scoped, tag = 'scoped memory for tpu_custom_call.1']
    #allocation7 [shape = 'u8[2048]{0}', space=vmem, size = 0x800, scoped, tag = 'output window, operand 0, single buffered']
    %9 = vsyncpa [#allocation5], 0
    %10 = vsyncpa [#allocation6], 0
    // Predicated region
    $region2: #{tpu_custom_call.1} parent=1 // pred_check
      _
    $region3: #{tpu_custom_call.1} parent=1 // pred_check_branch
      %12 = sbr.rel (0) target = $region5
    $region4: #{tpu_custom_call.1} parent=1 // pred_region
      %14 = vsyncadd [#allocation5], 0
      %s16 = sshll.u32 %s1, 4
      %s17 = int_to_ptr.hbm [resolvable:$true] %s16
      %s18 = sshll.u32 [#allocation4], 4
      %s19 = int_to_ptr.vmem [resolvable:$true] %s18
      %21 = dma.hbm_to_vmem [thread:$0]  %s17, 64, %s19, [#allocation5]
    $region5: #{tpu_custom_call.1} parent=1 // pred_fallthru
      _
    // Predicated region
    $region6: #{tpu_custom_call.1} parent=1 // pred_check
      _
    $region7: #{tpu_custom_call.1} parent=1 // pred_check_branch
      %23 = sbr.rel (0) target = $region9
    $region8: #{tpu_custom_call.1} parent=1 // pred_region
      _
    $region9: #{tpu_custom_call.1} parent=1 // pred_fallthru
      _
    // Predicated region
    $region10: #{tpu_custom_call.1} parent=1 // pred_check
      _
    $region11: #{tpu_custom_call.1} parent=1 // pred_check_branch
      %25 = sbr.rel (0) target = $region13
    $region12: #{tpu_custom_call.1} parent=1 // pred_region
      %27 = dma.done [#allocation5], 64
    $region13: #{tpu_custom_call.1} parent=1 // pred_fallthru
      _
    %v28 = vld [vmem:[#allocation4] sm:$0xf]
    %v29 = vld [vmem:[%s2] sm:$0x3]
    %v31 = vperm.slane %v29, 0
    %v32 = vperm.slane %v29, 1
    %v33 = vrot.slane %v32, 6
    %vm34 = vcmask 1041408
    %v35 = vsel %vm34, %v31, %v33
    %v37 = vadd.f32 %v28, %v35
    %38 = vst [vmem:[#allocation7] sm:$0xf] %v37
    // Predicated region
    $region14: #{tpu_custom_call.1} parent=1 // pred_check
      _
    $region15: #{tpu_custom_call.1} parent=1 // pred_check_branch
      %40 = sbr.rel (0) target = $region17
    $region16: #{tpu_custom_call.1} parent=1 // pred_region
      %42 = vsyncadd [#allocation6], 0
      %s44 = sshll.u32 [#allocation7], 4
      %s45 = int_to_ptr.vmem [resolvable:$true] %s44
      %s46 = sshll.u32 %s3, 4
      %s47 = int_to_ptr.hbm [resolvable:$true] %s46
      %49 = dma.vmem_to_hbm [thread:$0]  %s45, 64, %s47, [#allocation6]
    $region17: #{tpu_custom_call.1} parent=1 // pred_fallthru
      _
    // Predicated region
    $region18: #{tpu_custom_call.1} parent=1 // pred_check
      _
    $region19: #{tpu_custom_call.1} parent=1 // pred_check_branch
      %51 = sbr.rel (0) target = $region21
    $region20: #{tpu_custom_call.1} parent=1 // pred_region
      %53 = dma.done [#allocation6], 64
    $region21: #{tpu_custom_call.1} parent=1 // pred_fallthru
      _
    %54 = vsyncpa [#allocation5], 1
    %55 = vsyncpa [#allocation6], 1

</llo_original>
